<compile_context>
chip_gen: v7x
topology: tpu7x:2x2x1
jax: 0.10.0
libtpu: 0.0.40
codegen_flags: <defaults>
</compile_context>

<pallas_src>
import functools
import math

import jax
import jax.numpy as jnp
from jax import lax
from jax.experimental import pallas as pl
from jax.experimental.pallas import tpu as pltpu


# ---------------------------------------------------------------------------
# Projection kernels (weights already transposed to (in, out) layout).
# ---------------------------------------------------------------------------
def _project_q_kernel(x_ref, wt_ref, o_ref, *, scale):
    q = jnp.dot(x_ref[...], wt_ref[...], preferred_element_type=jnp.float32)
    o_ref[...] = (q * scale).astype(o_ref.dtype)


def _project_kv_kernel(xk_ref, xv_ref, wkt_ref, wvt_ref, k_ref, v_ref):
    k_ref[...] = jnp.dot(
        xk_ref[...], wkt_ref[...], preferred_element_type=jnp.float32
    ).astype(k_ref.dtype)
    v_ref[...] = jnp.dot(
        xv_ref[...], wvt_ref[...], preferred_element_type=jnp.float32
    ).astype(v_ref.dtype)


def _project_q(x, w_t, *, rows, scale):
    """x: (S, D) bf16, w_t: (D, D) bf16 -> (S, D) bf16, scaled by `scale`."""
    S, Din = x.shape
    Dout = w_t.shape[1]
    return pl.pallas_call(
        functools.partial(_project_q_kernel, scale=scale),
        out_shape=jax.ShapeDtypeStruct((S, Dout), jnp.bfloat16),
        grid_spec=pltpu.PrefetchScalarGridSpec(
            num_scalar_prefetch=0,
            grid=(S // rows,),
            in_specs=[
                pl.BlockSpec((rows, Din), lambda i: (i, 0)),
                pl.BlockSpec((Din, Dout), lambda i: (0, 0)),  # weight resident
            ],
            out_specs=pl.BlockSpec((rows, Dout), lambda i: (i, 0)),
        ),
        compiler_params=pltpu.CompilerParams(
            dimension_semantics=("parallel",)),
    )(x, w_t)


def _project_kv(xk, xv, wk_t, wv_t, *, rows):
    """Fused K / V projection (single launch).  Returns (K, V) in bf16."""
    S, Din = xk.shape
    Dout = wk_t.shape[1]
    return pl.pallas_call(
        _project_kv_kernel,
        out_shape=(jax.ShapeDtypeStruct((S, Dout), jnp.bfloat16),
                   jax.ShapeDtypeStruct((S, Dout), jnp.bfloat16)),
        grid_spec=pltpu.PrefetchScalarGridSpec(
            num_scalar_prefetch=0,
            grid=(S // rows,),
            in_specs=[
                pl.BlockSpec((rows, Din), lambda i: (i, 0)),
                pl.BlockSpec((rows, Din), lambda i: (i, 0)),
                pl.BlockSpec((Din, Dout), lambda i: (0, 0)),  # W_k^T resident
                pl.BlockSpec((Din, Dout), lambda i: (0, 0)),  # W_v^T resident
            ],
            out_specs=[
                pl.BlockSpec((rows, Dout), lambda i: (i, 0)),
                pl.BlockSpec((rows, Dout), lambda i: (i, 0)),
            ],
        ),
        compiler_params=pltpu.CompilerParams(
            dimension_semantics=("parallel",)),
    )(xk, xv, wk_t, wv_t)


# ---------------------------------------------------------------------------
# Flash-style attention kernel: grid = (num_q_blocks, num_kv_blocks).
# Q block is resident across the kv axis via its index_map (ignores ki).
# ---------------------------------------------------------------------------
def _flash_attn_kernel(q_ref, k_ref, v_ref, o_ref,
                       m_scratch, l_scratch, acc_scratch):
    ki = pl.program_id(1)

    @pl.when(ki == 0)
    def _():
        m_scratch[...] = jnp.full_like(m_scratch, -jnp.inf)
        l_scratch[...] = jnp.zeros_like(l_scratch)
        acc_scratch[...] = jnp.zeros_like(acc_scratch)

    # s = q @ k^T without any in-kernel transpose: contract last dims of both.
    s = lax.dot_general(
        q_ref[...], k_ref[...],
        dimension_numbers=(((1,), (1,)), ((), ())),
        preferred_element_type=jnp.float32)                    # (tq, tk)

    # Online (flash) softmax update, all stats in f32.
    m_prev = m_scratch[...]
    m_new = jnp.maximum(m_prev, jnp.max(s, axis=-1, keepdims=True))
    alpha = jnp.exp(m_prev - m_new)
    p = jnp.exp(s - m_new)
    l_scratch[...] = alpha * l_scratch[...] + jnp.sum(p, axis=-1, keepdims=True)
    acc_scratch[...] = alpha * acc_scratch[...] + jnp.dot(
        p.astype(v_ref.dtype), v_ref[...], preferred_element_type=jnp.float32)
    m_scratch[...] = m_new

    @pl.when(ki == pl.num_programs(1) - 1)
    def _():
        inv_l = pl.reciprocal(l_scratch[...], approx=True)     # EUP vrcp
        o_ref[...] = (acc_scratch[...] * inv_l).astype(o_ref.dtype)


# ---------------------------------------------------------------------------
# Wrapper
# ---------------------------------------------------------------------------
def attention_pallas(enc_q, enc_k, enc_v, w_q, w_k, w_v, mask=None,
                     *, tq=128, tk=128):
    """Single-head attention matching the PyTorch module's forward (mask=None).

    enc_q: (Sq, D), enc_k/enc_v: (Skv, D).  w_*: (D, D) PyTorch-Linear weights
    in (out, in) layout.  Returns float32 (Sq, D) attention scores.
    """
    # TODO(synk): boolean mask (masked_fill -1e9) not implemented.
    assert mask is None, "mask path not implemented in the Pallas kernel"

    Sq, D = enc_q.shape
    Skv, Dk = enc_k.shape
    assert enc_v.shape == (Skv, Dk) and Dk == D
    assert D % 128 == 0, "d_model must be lane-dense (multiple of 128)"
    tq = min(tq, Sq)
    tk = min(tk, Skv)
    assert Sq % tq == 0 and Skv % tk == 0, "seq len must divide the tile sizes"
    assert tq % 8 == 0 and tk % 8 == 0

    # Pre-transpose the weights once (out,in) -> (in,out) and go bf16 at the
    # pallas_call boundary (MXU operands bf16, f32 accumulation inside).
    wqt = jnp.transpose(w_q).astype(jnp.bfloat16)
    wkt = jnp.transpose(w_k).astype(jnp.bfloat16)
    wvt = jnp.transpose(w_v).astype(jnp.bfloat16)
    bq = enc_q.astype(jnp.bfloat16)
    bk = enc_k.astype(jnp.bfloat16)
    bv = enc_v.astype(jnp.bfloat16)

    scale = 1.0 / math.sqrt(float(D))

    # Hoisted projections: Q (scale folded in), then K and V fused in one call.
    q = _project_q(bq, wqt, rows=tq, scale=scale)
    k, v = _project_kv(bk, bv, wkt, wvt, rows=tk)

    nq, nk = Sq // tq, Skv // tk

    cost = pl.CostEstimate(
        flops=2 * (2 * Sq * Skv * D),               # QK^T + AV
        transcendentals=Sq * Skv,                   # exp in softmax
        bytes_accessed=(Sq * D * 2                  # Q (bf16, resident per block)
                        + 2 * nq * Skv * D * 2      # K, V re-streamed per q block
                        + Sq * D * 4),              # f32 output
    )

    out = pl.pallas_call(
        _flash_attn_kernel,
        out_shape=jax.ShapeDtypeStruct((Sq, D), jnp.float32),
        grid_spec=pltpu.PrefetchScalarGridSpec(
            num_scalar_prefetch=0,
            grid=(nq, nk),
            in_specs=[
                pl.BlockSpec((tq, D), lambda qi, ki: (qi, 0)),   # Q (resident over ki)
                pl.BlockSpec((tk, D), lambda qi, ki: (ki, 0)),   # K
                pl.BlockSpec((tk, D), lambda qi, ki: (ki, 0)),   # V
            ],
            out_specs=pl.BlockSpec((tq, D), lambda qi, ki: (qi, 0)),
            scratch_shapes=[
                pltpu.VMEM((tq, 1), jnp.float32),    # running max m
                pltpu.VMEM((tq, 1), jnp.float32),    # running denom l
                pltpu.VMEM((tq, D), jnp.float32),    # output accumulator
            ],
        ),
        compiler_params=pltpu.CompilerParams(
            dimension_semantics=("parallel", "arbitrary")),
        cost_estimate=cost,
    )(q, k, v)

    return out


# ---------------------------------------------------------------------------
# Pure-JAX f32 reference mirroring the PyTorch forward (mask=None path).
# ---------------------------------------------------------------------------
def attention_ref(enc_q, enc_k, enc_v, w_q, w_k, w_v):
    q = enc_q @ w_q.T
    k = enc_k @ w_k.T
    v = enc_v @ w_v.T
    sim = (q @ k.T) / jnp.sqrt(jnp.float32(k.shape[1]))
    attn = jax.nn.softmax(sim, axis=-1)
    return attn @ v


if __name__ == "__main__":
    # Lane-dense shapes (D multiple of 128) so the MXU / stores are not >98%
    # padded; the module's own toy default is d_model=2, seq=3.
    S, D = 256, 128

    key = jax.random.PRNGKey(0)
    k_enc, k_wq, k_wk, k_wv = jax.random.split(key, 4)

    # Same encodings fed as q, k and v, as in the reference script.
    encodings = jax.random.normal(k_enc, (S, D), jnp.float32)
    enc_q = enc_k = enc_v = encodings

    # nn.Linear-style init: U(-1/sqrt(in), 1/sqrt(in)), weight shape (out, in).
    bound = 1.0 / math.sqrt(D)
    w_q = jax.random.uniform(k_wq, (D, D), jnp.float32, -bound, bound)
    w_k = jax.random.uniform(k_wk, (D, D), jnp.float32, -bound, bound)
    w_v = jax.random.uniform(k_wv, (D, D), jnp.float32, -bound, bound)

    out = attention_pallas(enc_q, enc_k, enc_v, w_q, w_k, w_v)
    out = jax.block_until_ready(out)

    ref = attention_ref(enc_q, enc_k, enc_v, w_q, w_k, w_v)
    assert out.shape == (S, D)
    max_err = jnp.max(jnp.abs(out - ref))
    assert jnp.allclose(out, ref, atol=1e-2, rtol=1e-2), max_err

    print("KERNEL_OK")
</pallas_src>

<mosaic_0001>
module attributes {stable_mosaic.version = 11 : i64} {
  func.func @_project_q_kernel(%arg0: i32, %arg1: memref<128x128xbf16, #tpu.memory_space<vmem>>, %arg2: memref<128x128xbf16, #tpu.memory_space<vmem>>, %arg3: memref<128x128xbf16, #tpu.memory_space<vmem>>) attributes {dimension_semantics = [#tpu.dimension_semantics<parallel>], iteration_bounds = array<i64: 2>, scalar_prefetch = 0 : i64, scratch_operands = 0 : i64, tpu.core_type = #tpu.core_type<tc>, window_params = [{transform_indices = @transform_0, window_bounds = array<i64: 128, 128>}, {pipeline_mode = #tpu.pipeline_mode<synchronous>, transform_indices = @transform_1, window_bounds = array<i64: 128, 128>}, {transform_indices = @transform_2, window_bounds = array<i64: 128, 128>}]} {
    %c0 = arith.constant 0 : index
    %c0_0 = arith.constant 0 : index
    %0 = vector.load %arg1[%c0, %c0_0] : memref<128x128xbf16, #tpu.memory_space<vmem>>, vector<128x128xbf16>
    %c0_1 = arith.constant 0 : index
    %c0_2 = arith.constant 0 : index
    %1 = vector.load %arg2[%c0_1, %c0_2] : memref<128x128xbf16, #tpu.memory_space<vmem>>, vector<128x128xbf16>
    %cst = arith.constant dense<0.000000e+00> : vector<128x128xf32>
    %2 = tpu.matmul %0, %1, %cst {dimension_numbers = #tpu.dot_dimension_numbers<[1], [0], [0], [1], [0, 0, 1, 1], [], []>} : vector<128x128xbf16>, vector<128x128xbf16>, vector<128x128xf32> -> vector<128x128xf32>
    %cst_3 = arith.constant 0.0883883461 : f32
    %3 = vector.broadcast %cst_3 : f32 to vector<128x128xf32>
    %4 = arith.mulf %2, %3 : vector<128x128xf32>
    %5 = arith.truncf %4 : vector<128x128xf32> to vector<128x128xbf16>
    %c0_4 = arith.constant 0 : index
    %c0_5 = arith.constant 0 : index
    %6 = vector.load %arg3[%c0_4, %c0_5] : memref<128x128xbf16, #tpu.memory_space<vmem>>, vector<128x128xbf16>
    tpu.vector_store %arg3[%c0_4, %c0_5], %5 {strides = array<i32>} : memref<128x128xbf16, #tpu.memory_space<vmem>>, vector<128x128xbf16>,
    return
  }
  func.func @transform_0(%arg0: i32) -> (i32, i32) {
    %c0_i32 = arith.constant 0 : i32
    %c0_i32_0 = arith.constant 0 : i32
    return %arg0, %c0_i32 : i32, i32
  }
  func.func @transform_1(%arg0: i32) -> (i32, i32) {
    %c0_i32 = arith.constant 0 : i32
    %c0_i32_0 = arith.constant 0 : i32
    %c0_i32_1 = arith.constant 0 : i32
    return %c0_i32, %c0_i32_0 : i32, i32
  }
  func.func @transform_2(%arg0: i32) -> (i32, i32) {
    %c0_i32 = arith.constant 0 : i32
    %c0_i32_0 = arith.constant 0 : i32
    return %arg0, %c0_i32 : i32, i32
  }
}

</mosaic_0001>

<llo_original>
// kernel: tpu_custom_call.1
$region0: #{tpu_custom_call.1}
  #allocation0 [shape = 'u32[]', space=smem, size = 0x4, offset = 0x4, fixed_abs, tag = 'smem constant byte address 0x4 - core index']
  #allocation1 [shape = 'u32[144,128]{1,0:T(1,128)}', space=vmem, size = 0x12000, scoped, tag = 'internal scratch']
  %s0 = inlined_call_operand.hbm [shape: bf16[256,128], index: 0, kind: input, shape index: {}]
  %s1 = inlined_call_operand.hbm [shape: bf16[128,128], index: 1, kind: input, shape index: {}]
  %s2 = inlined_call_operand.hbm [shape: bf16[256,128], index: 2, kind: output, shape index: {}]
  %s3 = sld [smem:[#allocation0]]
  $region49: #{tpu_custom_call.1} parent=0
    _
  %s5 = ssub.s32 1, %s3
  %s6 = scalar_select 0, %s5, %s3
  $region1: #{tpu_custom_call.1} parent=0
    #allocation2 [shape = 'u8[65536]{0}', space=vmem, size = 0x10000, scoped, tag = 'input window, operand 0']
    #allocation3 [shape = 's32[2]{0}', space=sflag, size = 0x8, scoped, tag = 'scoped memory for tpu_custom_call.1']
    #allocation4 [shape = 's32[2]{0}', space=sflag, size = 0x8, scoped, tag = 'scoped memory for tpu_custom_call.1']
    #allocation5 [shape = 'u8[32768]{0}', space=vmem, size = 0x8000, scoped, tag = 'input window, operand 1, single buffered']
    #allocation6 [shape = 's32[1]{0}', space=sflag, size = 0x4, scoped, tag = 'scoped memory for tpu_custom_call.1']
    #allocation7 [shape = 'u8[65536]{0}', space=vmem, size = 0x10000, scoped, tag = 'output window, operand 0']
    %7 = vsyncpa [#allocation3], 0
    %s8 = scalar_lea.sflag [#allocation3], 1
    %9 = vsyncpa %s8, 0
    %10 = vsyncpa [#allocation6], 0
    %11 = vsyncpa [#allocation4], 0
    %s12 = scalar_lea.sflag [#allocation4], 1
    %13 = vsyncpa %s12, 0
    loop: start=0, step=1, limit=4
    $region2: #{tpu_custom_call.1} parent=1 // loop_pre_header
      _
    $region3: #{tpu_custom_call.1} parent=1 // loop_header
      %s15 = sphi 0, %s19
      %p16 = scmp.ge.s32.totalorder %s15, 4
      %s25 = sphi 0, %s27
      %s28 = sphi 0, %s25
      %s29 = sphi 0, %s28
      %s45 = sphi 0, %s29
      %s49 = sphi 0, %s49
      %s51 = sphi 0, %s49
      %s52 = sphi 0, %s51
      %s66 = sphi 0, %s52
      %s72 = sphi 0, %s74
      %s75 = sphi 0, %s72
      %s76 = sphi 0, %s75
      %s92 = sphi 0, %s76
    $region4: #{tpu_custom_call.1} parent=1 // loop_header_branch
      %18 = sbr.rel (%p16) target = $region8
    $region5: #{tpu_custom_call.1} parent=1 // loop_body
      %s20 = ssub.s32 %s15, 1
      %s21 = ssub.s32 %s15, 2
      %s22 = sadd.s32 %s15, 1
      %s23 = ssub.s32 %s15, %s22
      %p24 = scmp.eq.s32.totalorder %s23, 0
      %s26 = sadd.s32 %s25, 1
      %s27 = scalar_select %p24, %s25, %s26
      %p30 = pneg %p24
      %p31 = scmp.eq.s32.totalorder %s15, 1
      %p32 = por %p30, %p31
      %p33 = scmp.ne.s32.totalorder %s25, %s28
      %p34 = scmp.eq.s32.totalorder %s15, 0
      %p35 = por %p33, %p34
      %p36 = scmp.ne.s32.totalorder %s25, %s28
      %p37 = scmp.eq.s32.totalorder %s20, 1
      %p38 = por %p36, %p37
      %p39 = scmp.ne.s32.totalorder %s28, %s29
      %p40 = scmp.eq.s32.totalorder %s20, 0
      %p41 = por %p39, %p40
      %p42 = scmp.ne.s32.totalorder %s28, %s29
      %p43 = scmp.eq.s32.totalorder %s21, 1
      %p44 = por %p42, %p43
      %p46 = scmp.ne.s32.totalorder %s29, %s45
      %p47 = scmp.eq.s32.totalorder %s21, 0
      %p48 = por %p46, %p47
      %s50 = sadd.s32 %s49, 1
      %p53 = scmp.eq.s32.totalorder %s15, 1
      %p54 = scmp.ne.s32.totalorder %s49, %s51
      %p55 = scmp.eq.s32.totalorder %s15, 0
      %p56 = por %p54, %p55
      %p57 = scmp.ne.s32.totalorder %s49, %s51
      %p58 = scmp.eq.s32.totalorder %s20, 1
      %p59 = por %p57, %p58
      %p60 = scmp.ne.s32.totalorder %s51, %s52
      %p61 = scmp.eq.s32.totalorder %s20, 0
      %p62 = por %p60, %p61
      %p63 = scmp.ne.s32.totalorder %s51, %s52
      %p64 = scmp.eq.s32.totalorder %s21, 1
      %p65 = por %p63, %p64
      %p67 = scmp.ne.s32.totalorder %s52, %s66
      %p68 = scmp.eq.s32.totalorder %s21, 0
      %p69 = por %p67, %p68
      %s70 = ssub.s32 %s15, %s22
      %p71 = scmp.eq.s32.totalorder %s70, 0
      %s73 = sadd.s32 %s72, 1
      %s74 = scalar_select %p71, %s72, %s73
      %p77 = pneg %p71
      %p78 = scmp.eq.s32.totalorder %s15, 1
      %p79 = por %p77, %p78
      %p80 = scmp.ne.s32.totalorder %s72, %s75
      %p81 = scmp.eq.s32.totalorder %s15, 0
      %p82 = por %p80, %p81
      %p83 = scmp.ne.s32.totalorder %s72, %s75
      %p84 = scmp.eq.s32.totalorder %s20, 1
      %p85 = por %p83, %p84
      %p86 = scmp.ne.s32.totalorder %s75, %s76
      %p87 = scmp.eq.s32.totalorder %s20, 0
      %p88 = por %p86, %p87
      %p89 = scmp.ne.s32.totalorder %s75, %s76
      %p90 = scmp.eq.s32.totalorder %s21, 1
      %p91 = por %p89, %p90
      %p93 = scmp.ne.s32.totalorder %s76, %s92
      %p94 = scmp.eq.s32.totalorder %s21, 0
      %p95 = por %p93, %p94
      %p96 = scmp.le.s32.totalorder 1, %s15
      %p97 = scmp.lt.s32.totalorder %s15, 3
      %p98 = pnand %p96, %p97
      %p99 = pneg %p98
      // Predicated region
      $region9: #{tpu_custom_call.1} parent=5 // pred_check
        _
      $region10: #{tpu_custom_call.1} parent=5 // pred_check_branch
        %101 = sbr.rel (%p98) target = $region12
      $region11: #{tpu_custom_call.1} parent=5 // pred_region
        %s102 = ssub.s32 %s15, 1
        // Predicated region
        $region13: #{tpu_custom_call.1} parent=11 // pred_check
          %p103 = pneg %p62
        $region14: #{tpu_custom_call.1} parent=11 // pred_check_branch
          %105 = sbr.rel (%p103) target = $region16
        $region15: #{tpu_custom_call.1} parent=11 // pred_region
          %s107 = ssub.s32 1024, 1024
          %108 = vsyncadd [#allocation6], %s107
          %s109 = sshll.u32 [#allocation5], 4
          %s110 = int_to_ptr.vmem [resolvable:$true] %s109
          %115 = dma.hbm_to_vmem [thread:$0]  %s1, 1024, %s110, [#allocation6], 64, 64, 4
        $region16: #{tpu_custom_call.1} parent=11 // pred_fallthru
          _
      $region12: #{tpu_custom_call.1} parent=5 // pred_fallthru
        _
      %p116 = scmp.lt.s32.totalorder %s15, 2
      // Predicated region
      $region17: #{tpu_custom_call.1} parent=5 // pred_check
        %p117 = pneg %p116
      $region18: #{tpu_custom_call.1} parent=5 // pred_check_branch
        %119 = sbr.rel (%p117) target = $region20
      $region19: #{tpu_custom_call.1} parent=5 // pred_region
        // Predicated region
        $region21: #{tpu_custom_call.1} parent=19 // pred_check
          %p120 = pneg %p35
        $region22: #{tpu_custom_call.1} parent=19 // pred_check_branch
          %122 = sbr.rel (%p120) target = $region24
        $region23: #{tpu_custom_call.1} parent=19 // pred_region
          %s123 = sand.u32 %s25, 1
          %s124 = scalar_lea.sflag [#allocation3], %s123
          %s125 = sand.u32 %s25, 1
          %s126 = smul.addr %s125, 64
          %s127 = scalar_lea.vmem [#allocation2], %s126
          %s128 = smul.u32 16, %s15
          %s130 = ssub.s32 1024, 1024
          %131 = vsyncadd %s124, %s130
          %s132 = smul.addr %s128, 64
          %s133 = scalar_lea.hbm %s0, %s132
          %s134 = sshll.u32 %s127, 4
          %s135 = int_to_ptr.vmem [resolvable:$true] %s134
          %140 = dma.hbm_to_vmem [thread:$0]  %s133, 1024, %s135, %s124, 64, 64, 4
        $region24: #{tpu_custom_call.1} parent=19 // pred_fallthru
          _
      $region20: #{tpu_custom_call.1} parent=5 // pred_fallthru
        _
      %p141 = scmp.le.s32.totalorder 1, %s15
      %p142 = scmp.lt.s32.totalorder %s15, 3
      %p143 = pnand %p141, %p142
      %p144 = pneg %p143
      // Predicated region
      $region25: #{tpu_custom_call.1} parent=5 // pred_check
        _
      $region26: #{tpu_custom_call.1} parent=5 // pred_check_branch
        %146 = sbr.rel (%p143) target = $region28
      $region27: #{tpu_custom_call.1} parent=5 // pred_region
        %s147 = ssub.s32 %s15, 1
        %s148 = sand.u32 %s28, 1
        %s149 = scalar_lea.sflag [#allocation3], %s148
        %s150 = sand.u32 %s28, 1
        %s151 = smul.addr %s150, 64
        %s152 = scalar_lea.vmem [#allocation2], %s151
        // Predicated region
        $region29: #{tpu_custom_call.1} parent=27 // pred_check
          %p153 = pneg %p41
        $region30: #{tpu_custom_call.1} parent=27 // pred_check_branch
          %155 = sbr.rel (%p153) target = $region32
        $region31: #{tpu_custom_call.1} parent=27 // pred_region
          %156 = dma.done %s149, 1024
        $region32: #{tpu_custom_call.1} parent=27 // pred_fallthru
          _
        // Predicated region
        $region33: #{tpu_custom_call.1} parent=27 // pred_check
          %p157 = pneg %p62
        $region34: #{tpu_custom_call.1} parent=27 // pred_check_branch
          %159 = sbr.rel (%p157) target = $region36
        $region35: #{tpu_custom_call.1} parent=27 // pred_region
          %160 = dma.done [#allocation6], 1024
        $region36: #{tpu_custom_call.1} parent=27 // pred_fallthru
          _
        %s161 = sand.u32 %s28, 1
        %s162 = scalar_lea.sflag [#allocation3], %s161
        %s163 = sand.u32 %s28, 1
        %s164 = smul.addr %s163, 64
        %s165 = scalar_lea.vmem [#allocation2], %s164
        %p166 = pneg %p41
        %p167 = pneg %p38
        %p168 = pneg %p62
        %p169 = pneg %p59
        %p170 = pneg %p88
        %p171 = pneg %p85
        %s172 = sand.u32 %s75, 1
        %s173 = scalar_lea.sflag [#allocation4], %s172
        %s174 = sand.u32 %s75, 1
        %s175 = smul.addr %s174, 64
        %s176 = scalar_lea.vmem [#allocation7], %s175
        %s177 = smul.u32 16, %s20
        %s178 = smul.u32 16, %s20
        %v180 = vld [vmem:[%s152] sm:$0xf]
        %v181 = vld [vmem:[%s152 + $0x4] sm:$0xf]
        %v182 = vld [vmem:[%s152 + $0x8] sm:$0xf]
        %v183 = vld [vmem:[%s152 + $0xc] sm:$0xf]
        %v184 = vld [vmem:[%s152 + $0x10] sm:$0xf]
        %v185 = vld [vmem:[%s152 + $0x14] sm:$0xf]
        %v186 = vld [vmem:[%s152 + $0x18] sm:$0xf]
        %v187 = vld [vmem:[%s152 + $0x1c] sm:$0xf]
        %v188 = vld [vmem:[%s152 + $0x20] sm:$0xf]
        %v189 = vld [vmem:[%s152 + $0x24] sm:$0xf]
        %v190 = vld [vmem:[%s152 + $0x28] sm:$0xf]
        %v191 = vld [vmem:[%s152 + $0x2c] sm:$0xf]
        %v192 = vld [vmem:[%s152 + $0x30] sm:$0xf]
        %v193 = vld [vmem:[%s152 + $0x34] sm:$0xf]
        %v194 = vld [vmem:[%s152 + $0x38] sm:$0xf]
        %v195 = vld [vmem:[%s152 + $0x3c] sm:$0xf]
        %v196 = vld [vmem:[#allocation5] sm:$0xf]
        %v197 = vld [vmem:[#allocation5 + $0x4] sm:$0xf]
        %v198 = vld [vmem:[#allocation5 + $0x8] sm:$0xf]
        %v199 = vld [vmem:[#allocation5 + $0xc] sm:$0xf]
        %v200 = vld [vmem:[#allocation5 + $0x10] sm:$0xf]
        %v201 = vld [vmem:[#allocation5 + $0x14] sm:$0xf]
        %v202 = vld [vmem:[#allocation5 + $0x18] sm:$0xf]
        %v203 = vld [vmem:[#allocation5 + $0x1c] sm:$0xf]
        %v204 = vld [vmem:[#allocation5 + $0x20] sm:$0xf]
        %v205 = vld [vmem:[#allocation5 + $0x24] sm:$0xf]
        %v206 = vld [vmem:[#allocation5 + $0x28] sm:$0xf]
        %v207 = vld [vmem:[#allocation5 + $0x2c] sm:$0xf]
        %v208 = vld [vmem:[#allocation5 + $0x30] sm:$0xf]
        %v209 = vld [vmem:[#allocation5 + $0x34] sm:$0xf]
        %v210 = vld [vmem:[#allocation5 + $0x38] sm:$0xf]
        %v211 = vld [vmem:[#allocation5 + $0x3c] sm:$0xf]
        %v228 = vunpack.c.l.b16 %v180
        %v229 = vunpack.c.l.b16 %v181
        %v230 = vunpack.c.l.b16 %v182
        %v231 = vunpack.c.l.b16 %v183
        %v232 = vunpack.c.l.b16 %v184
        %v233 = vunpack.c.l.b16 %v185
        %v234 = vunpack.c.l.b16 %v186
        %v235 = vunpack.c.l.b16 %v187
        %v236 = vunpack.c.l.b16 %v188
        %v237 = vunpack.c.l.b16 %v189
        %v238 = vunpack.c.l.b16 %v190
        %v239 = vunpack.c.l.b16 %v191
        %v240 = vunpack.c.l.b16 %v192
        %v241 = vunpack.c.l.b16 %v193
        %v242 = vunpack.c.l.b16 %v194
        %v243 = vunpack.c.l.b16 %v195
        %v244 = vpack.c.b16 %v229, %v228
        %v245 = vpack.c.b16 %v231, %v230
        %v246 = vpack.c.b16 %v233, %v232
        %v247 = vpack.c.b16 %v235, %v234
        %v248 = vpack.c.b16 %v237, %v236
        %v249 = vpack.c.b16 %v239, %v238
        %v250 = vpack.c.b16 %v241, %v240
        %v251 = vpack.c.b16 %v243, %v242
        %v276 = vunpack.c.l.b16 %v196
        %v277 = vunpack.c.l.b16 %v197
        %v278 = vunpack.c.l.b16 %v198
        %v279 = vunpack.c.l.b16 %v199
        %v280 = vunpack.c.l.b16 %v200
        %v281 = vunpack.c.l.b16 %v201
        %v282 = vunpack.c.l.b16 %v202
        %v283 = vunpack.c.l.b16 %v203
        %v284 = vunpack.c.l.b16 %v204
        %v285 = vunpack.c.l.b16 %v205
        %v286 = vunpack.c.l.b16 %v206
        %v287 = vunpack.c.l.b16 %v207
        %v288 = vunpack.c.l.b16 %v208
        %v289 = vunpack.c.l.b16 %v209
        %v290 = vunpack.c.l.b16 %v210
        %v291 = vunpack.c.l.b16 %v211
        %v292 = vpack.c.b16 %v277, %v276
        %v293 = vpack.c.b16 %v279, %v278
        %v294 = vpack.c.b16 %v281, %v280
        %v295 = vpack.c.b16 %v283, %v282
        %v296 = vpack.c.b16 %v285, %v284
        %v297 = vpack.c.b16 %v287, %v286
        %v298 = vpack.c.b16 %v289, %v288
        %v299 = vpack.c.b16 %v291, %v290
        %308 = vmatprep.subr.bf16.mxu0 0
        %309 = vmatpush1.bf16.msra.mxu0 %v292
        %310 = vmatprep.subr.bf16.mxu0 0
        %311 = vmatpush1.bf16.msra.mxu0 %v293
        %312 = vmatprep.subr.bf16.mxu0 0
        %313 = vmatpush1.bf16.msra.mxu0 %v294
        %314 = vmatprep.subr.bf16.mxu0 0
        %315 = vmatpush1.bf16.msra.mxu0 %v295
        %316 = vmatprep.subr.bf16.mxu0 0
        %317 = vmatpush1.bf16.msra.mxu0 %v296
        %318 = vmatprep.subr.bf16.mxu0 0
        %319 = vmatpush1.bf16.msra.mxu0 %v297
        %320 = vmatprep.subr.bf16.mxu0 0
        %321 = vmatpush1.bf16.msra.mxu0 %v298
        %322 = vmatprep.subr.bf16.mxu0 0
        %323 = vmatpush1.bf16.msra.mxu0 %v299
        %324 = vmatprep.subr.bf16.mxu0 0
        %325 = vmatpush1.bf16.msra.mxu0 0
        %326 = vmatprep.subr.bf16.mxu0 0
        %327 = vmatpush1.bf16.msra.mxu0 0
        %328 = vmatprep.subr.bf16.mxu0 0
        %329 = vmatpush1.bf16.msra.mxu0 0
        %330 = vmatprep.subr.bf16.mxu0 0
        %331 = vmatpush1.bf16.msra.mxu0 0
        %332 = vmatprep.subr.bf16.mxu0 0
        %333 = vmatpush1.bf16.msra.mxu0 0
        %334 = vmatprep.subr.bf16.mxu0 0
        %335 = vmatpush1.bf16.msra.mxu0 0
        %336 = vmatprep.subr.bf16.mxu0 0
        %337 = vmatpush1.bf16.msra.mxu0 0
        %338 = vmatprep.subr.bf16.mxu0 0
        %339 = vmatpush1.bf16.msra.mxu0 0
        %340 = vmatprep.mubr.bf16.mxu0 0
        %341 = vmatmul.mubr.bf16.gmra.mrb[0].mxu0 %v244
        %v342 = vpop.f32.mrb[0].mxu0
        %v343 = vadd.f32 0.0, %v342
        %v344 = vpop.f32.mrb[0].mxu0
        %v345 = vpop.f32.mrb[0].mxu0
        %v346 = vadd.f32 0.0, %v345
        %v347 = vpop.f32.mrb[0].mxu0
        %348 = vmatprep.mubr.bf16.mxu0 0
        %349 = vmatmul.mubr.bf16.gmra.mrb[0].mxu0 %v245
        %v350 = vpop.f32.mrb[0].mxu0
        %v351 = vadd.f32 0.0, %v350
        %v352 = vpop.f32.mrb[0].mxu0
        %v353 = vpop.f32.mrb[0].mxu0
        %v354 = vadd.f32 0.0, %v353
        %v355 = vpop.f32.mrb[0].mxu0
        %356 = vmatprep.mubr.bf16.mxu0 0
        %357 = vmatmul.mubr.bf16.gmra.mrb[0].mxu0 %v246
        %v358 = vpop.f32.mrb[0].mxu0
        %v359 = vadd.f32 0.0, %v358
        %v360 = vpop.f32.mrb[0].mxu0
        %v361 = vpop.f32.mrb[0].mxu0
        %v362 = vadd.f32 0.0, %v361
        %v363 = vpop.f32.mrb[0].mxu0
        %364 = vmatprep.mubr.bf16.mxu0 0
        %365 = vmatmul.mubr.bf16.gmra.mrb[0].mxu0 %v247
        %v366 = vpop.f32.mrb[0].mxu0
        %v367 = vadd.f32 0.0, %v366
        %v368 = vpop.f32.mrb[0].mxu0
        %v369 = vpop.f32.mrb[0].mxu0
        %v370 = vadd.f32 0.0, %v369
        %v371 = vpop.f32.mrb[0].mxu0
        %372 = vmatprep.mubr.bf16.mxu0 0
        %373 = vmatmul.mubr.bf16.gmra.mrb[0].mxu0 %v248
        %v374 = vpop.f32.mrb[0].mxu0
        %v375 = vadd.f32 0.0, %v374
        %v376 = vpop.f32.mrb[0].mxu0
        %v377 = vpop.f32.mrb[0].mxu0
        %v378 = vadd.f32 0.0, %v377
        %v379 = vpop.f32.mrb[0].mxu0
        %380 = vmatprep.mubr.bf16.mxu0 0
        %381 = vmatmul.mubr.bf16.gmra.mrb[0].mxu0 %v249
        %v382 = vpop.f32.mrb[0].mxu0
        %v383 = vadd.f32 0.0, %v382
        %v384 = vpop.f32.mrb[0].mxu0
        %v385 = vpop.f32.mrb[0].mxu0
        %v386 = vadd.f32 0.0, %v385
        %v387 = vpop.f32.mrb[0].mxu0
        %388 = vmatprep.mubr.bf16.mxu0 0
        %389 = vmatmul.mubr.bf16.gmra.mrb[0].mxu0 %v250
        %v390 = vpop.f32.mrb[0].mxu0
        %v391 = vadd.f32 0.0, %v390
        %v392 = vpop.f32.mrb[0].mxu0
        %v393 = vpop.f32.mrb[0].mxu0
        %v394 = vadd.f32 0.0, %v393
        %v395 = vpop.f32.mrb[0].mxu0
        %396 = vmatprep.mubr.bf16.mxu0 0
        %397 = vmatmul.mubr.bf16.gmra.mrb[0].mxu0 %v251
        %v398 = vpop.f32.mrb[0].mxu0
        %v399 = vadd.f32 0.0, %v398
        %v400 = vpop.f32.mrb[0].mxu0
        %v401 = vpop.f32.mrb[0].mxu0
        %v402 = vadd.f32 0.0, %v401
        %v403 = vpop.f32.mrb[0].mxu0
        %404 = vdwg.mxu0
        %v405 = vmul.f32 %v343, 0.088388346
        %v406 = vmul.f32 %v346, 0.088388346
        %v407 = vmul.f32 %v351, 0.088388346
        %v408 = vmul.f32 %v354, 0.088388346
        %v409 = vmul.f32 %v359, 0.088388346
        %v410 = vmul.f32 %v362, 0.088388346
        %v411 = vmul.f32 %v367, 0.088388346
        %v412 = vmul.f32 %v370, 0.088388346
        %v413 = vmul.f32 %v375, 0.088388346
        %v414 = vmul.f32 %v378, 0.088388346
        %v415 = vmul.f32 %v383, 0.088388346
        %v416 = vmul.f32 %v386, 0.088388346
        %v417 = vmul.f32 %v391, 0.088388346
        %v418 = vmul.f32 %v394, 0.088388346
        %v419 = vmul.f32 %v399, 0.088388346
        %v420 = vmul.f32 %v402, 0.088388346
        %v421 = vpack.c.bf16 %v406, %v405
        %v422 = vpack.c.bf16 %v408, %v407
        %v423 = vpack.c.bf16 %v410, %v409
        %v424 = vpack.c.bf16 %v412, %v411
        %v425 = vpack.c.bf16 %v414, %v413
        %v426 = vpack.c.bf16 %v416, %v415
        %v427 = vpack.c.bf16 %v418, %v417
        %v428 = vpack.c.bf16 %v420, %v419
        %v437 = vunpack.c.l.b16 %v421
        %v438 = vunpack.c.h.b16 %v421
        %v439 = vunpack.c.l.b16 %v422
        %v440 = vunpack.c.h.b16 %v422
        %v441 = vunpack.c.l.b16 %v423
        %v442 = vunpack.c.h.b16 %v423
        %v443 = vunpack.c.l.b16 %v424
        %v444 = vunpack.c.h.b16 %v424
        %v445 = vunpack.c.l.b16 %v425
        %v446 = vunpack.c.h.b16 %v425
        %v447 = vunpack.c.l.b16 %v426
        %v448 = vunpack.c.h.b16 %v426
        %v449 = vunpack.c.l.b16 %v427
        %v450 = vunpack.c.h.b16 %v427
        %v451 = vunpack.c.l.b16 %v428
        %v452 = vunpack.c.h.b16 %v428
        %v453 = vpack.c.b16 %v437, %v437
        %v454 = vpack.c.b16 %v438, %v438
        %v455 = vpack.c.b16 %v439, %v439
        %v456 = vpack.c.b16 %v440, %v440
        %v457 = vpack.c.b16 %v441, %v441
        %v458 = vpack.c.b16 %v442, %v442
        %v459 = vpack.c.b16 %v443, %v443
        %v460 = vpack.c.b16 %v444, %v444
        %v461 = vpack.c.b16 %v445, %v445
        %v462 = vpack.c.b16 %v446, %v446
        %v463 = vpack.c.b16 %v447, %v447
        %v464 = vpack.c.b16 %v448, %v448
        %v465 = vpack.c.b16 %v449, %v449
        %v466 = vpack.c.b16 %v450, %v450
        %v467 = vpack.c.b16 %v451, %v451
        %v468 = vpack.c.b16 %v452, %v452
        %485 = vst [vmem:[%s176] sm:$0xf] %v453
        %486 = vst [vmem:[%s176 + $0x4] sm:$0xf] %v454
        %487 = vst [vmem:[%s176 + $0x8] sm:$0xf] %v455
        %488 = vst [vmem:[%s176 + $0xc] sm:$0xf] %v456
        %489 = vst [vmem:[%s176 + $0x10] sm:$0xf] %v457
        %490 = vst [vmem:[%s176 + $0x14] sm:$0xf] %v458
        %491 = vst [vmem:[%s176 + $0x18] sm:$0xf] %v459
        %492 = vst [vmem:[%s176 + $0x1c] sm:$0xf] %v460
        %493 = vst [vmem:[%s176 + $0x20] sm:$0xf] %v461
        %494 = vst [vmem:[%s176 + $0x24] sm:$0xf] %v462
        %495 = vst [vmem:[%s176 + $0x28] sm:$0xf] %v463
        %496 = vst [vmem:[%s176 + $0x2c] sm:$0xf] %v464
        %497 = vst [vmem:[%s176 + $0x30] sm:$0xf] %v465
        %498 = vst [vmem:[%s176 + $0x34] sm:$0xf] %v466
        %499 = vst [vmem:[%s176 + $0x38] sm:$0xf] %v467
        %500 = vst [vmem:[%s176 + $0x3c] sm:$0xf] %v468
        %s501 = sand.u32 %s75, 1
        %s502 = scalar_lea.sflag [#allocation4], %s501
        %s503 = sand.u32 %s75, 1
        %s504 = smul.addr %s503, 64
        %s505 = scalar_lea.vmem [#allocation7], %s504
        // Predicated region
        $region37: #{tpu_custom_call.1} parent=27 // pred_check
          %p506 = pneg %p85
        $region38: #{tpu_custom_call.1} parent=27 // pred_check_branch
          %508 = sbr.rel (%p506) target = $region40
        $region39: #{tpu_custom_call.1} parent=27 // pred_region
          %s509 = smul.u32 16, %s20
          %s511 = ssub.s32 1024, 1024
          %512 = vsyncadd %s502, %s511
          %s513 = smul.addr %s509, 64
          %s514 = scalar_lea.hbm %s2, %s513
          %s515 = sshll.u32 %s505, 4
          %s516 = int_to_ptr.vmem [resolvable:$true] %s515
          %521 = dma.vmem_to_hbm [thread:$0]  %s516, 1024, %s514, %s502, 64, 64, 4
        $region40: #{tpu_custom_call.1} parent=27 // pred_fallthru
          _
      $region28: #{tpu_custom_call.1} parent=5 // pred_fallthru
        _
      %p522 = scmp.le.s32.totalorder 2, %s15
      // Predicated region
      $region41: #{tpu_custom_call.1} parent=5 // pred_check
        %p523 = pneg %p522
      $region42: #{tpu_custom_call.1} parent=5 // pred_check_branch
        %525 = sbr.rel (%p523) target = $region44
      $region43: #{tpu_custom_call.1} parent=5 // pred_region
        %s526 = ssub.s32 %s15, 2
        // Predicated region
        $region45: #{tpu_custom_call.1} parent=43 // pred_check
          %p527 = pneg %p91
        $region46: #{tpu_custom_call.1} parent=43 // pred_check_branch
          %529 = sbr.rel (%p527) target = $region48
        $region47: #{tpu_custom_call.1} parent=43 // pred_region
          %s530 = sand.u32 %s76, 1
          %s531 = scalar_lea.sflag [#allocation4], %s530
          %s532 = sand.u32 %s76, 1
          %s533 = smul.addr %s532, 64
          %s534 = scalar_lea.vmem [#allocation7], %s533
          %535 = dma.done %s531, 1024
        $region48: #{tpu_custom_call.1} parent=43 // pred_fallthru
          _
      $region44: #{tpu_custom_call.1} parent=5 // pred_fallthru
        _
    $region6: #{tpu_custom_call.1} parent=1 // loop_footer
      %s19 = sadd.s32 1, %s15
    $region7: #{tpu_custom_call.1} parent=1 // loop_footer_branch
      %14 = sbr.rel target = $region3
    $region8: #{tpu_custom_call.1} parent=1 // loop_exit
      _
    %536 = vsyncpa [#allocation3], 1
    %s537 = scalar_lea.sflag [#allocation3], 1
    %538 = vsyncpa %s537, 1
    %539 = vsyncpa [#allocation6], 1
    %540 = vsyncpa [#allocation4], 1
    %s541 = scalar_lea.sflag [#allocation4], 1
    %542 = vsyncpa %s541, 1

</llo_original>
